<compile_context>
chip_gen: v5e
topology: v5e:2x2
jax: 0.10.0
libtpu: 0.0.40
codegen_flags: <defaults>
</compile_context>

<pallas_src>
import functools

import jax
import jax.numpy as jnp
from jax.experimental import pallas as pl
from jax.experimental.pallas import tpu as pltpu


def _block_kernel(p_ref, w_ref, b_ref, o_ref, sum_ref, sq_ref, *,
                  thw, hwo, inv_hw, eps, neg_slope, needs_mask):
    # p_ref : (K, THW)         bf16 im2col patch tile (HW on lanes)
    # w_ref : (Cout, K)        bf16 reshaped conv weight (resident)
    # b_ref : (Cout, 1)        f32 conv bias (resident)
    # o_ref : (Cout, HWo_pad)  f32 output slab, resident across the t axis
    # sum_ref, sq_ref : (Cout, 128) f32 lane-partial InstanceNorm stats
    t = pl.program_id(1)
    num_t = pl.num_programs(1)

    @pl.when(t == 0)
    def _init():
        sum_ref[...] = jnp.zeros_like(sum_ref)
        sq_ref[...] = jnp.zeros_like(sq_ref)

    # Conv-as-GEMM for this HW tile: (Cout, K) @ (K, THW) -> (Cout, THW).
    # bf16 operands feed the MXU, accumulation and post-math in f32.
    y = jnp.dot(w_ref[...], p_ref[...], preferred_element_type=jnp.float32)
    y = y + b_ref[...]                                   # bias, f32 broadcast

    # Padded lanes (beyond the true HWo) must not contribute to the stats.
    if needs_mask:
        col = jax.lax.broadcasted_iota(jnp.int32, (1, thw), 1) + t * thw
        ym = jnp.where(col < hwo, y, 0.0)
    else:
        ym = y

    # Lane-partial stats: 128-aligned chunk adds are pure VPU work; the single
    # 128-wide cross-lane reduce is deferred to the finalize step.
    nchunks = thw // 128
    s = ym[:, 0:128]
    q = s * s
    for c in range(1, nchunks):
        blk = ym[:, c * 128:(c + 1) * 128]
        s = s + blk
        q = q + blk * blk
    sum_ref[...] += s
    sq_ref[...] += q

    # Lane-offset, lane-dense stash of the pre-norm tile (unmasked stores).
    off = pl.multiple_of(t * thw, 128)
    o_ref[:, pl.ds(off, thw)] = y

    @pl.when(t == num_t - 1)
    def _finalize():
        tot = jnp.sum(sum_ref[...], axis=1, keepdims=True)      # (Cout, 1)
        tot_sq = jnp.sum(sq_ref[...], axis=1, keepdims=True)    # (Cout, 1)
        mean = tot * inv_hw
        var = jnp.maximum(tot_sq * inv_hw - mean * mean, 0.0)   # biased var
        inv_std = jax.lax.rsqrt(var + eps)                      # EUP
        shift = mean * inv_std
        z = o_ref[...] * inv_std - shift                        # normalize
        o_ref[...] = jnp.where(z >= 0.0, z, neg_slope * z)      # LeakyReLU


def _round_up(x, m):
    return ((x + m - 1) // m) * m


def _vmem_capacity_bytes():
    try:
        return int(pltpu.get_tpu_info().vmem_capacity_bytes)
    except Exception:
        return 64 * 1024 * 1024      # conservative fallback: v7x per-TC VMEM


def _plan_tiles(hwo, k, cout, max_tile=8192):
    """Pick a 128-aligned HW tile + padded HWo + vmem limit from a VMEM budget."""
    cap = _vmem_capacity_bytes()
    budget = int(cap * 0.55)                     # headroom for compiler scratch
    hwo128 = _round_up(hwo, 128)
    # Fixed (tile-independent) VMEM costs, bytes.
    fixed = (2 * cout * k * 2                    # bf16 weight, double-buffered
             + 2 * cout * 1 * 4                  # f32 bias
             + 2 * cout * hwo128 * 4             # resident f32 output (x2 at n edge)
             + 2 * cout * 128 * 4                # stats scratch
             + (1 << 20))                        # slack
    per_lane = 2 * k * 2 * 2                     # double-buffered bf16 patch column
    avail = budget - fixed
    max_thw = max((avail // per_lane) // 128 * 128, 128) if avail > 0 else 128
    max_thw = min(max_thw, max_tile)
    if hwo128 <= max_thw:
        thw, t_tiles = hwo128, 1
    else:
        t_tiles = (hwo128 + max_thw - 1) // max_thw
        thw = _round_up((hwo + t_tiles - 1) // t_tiles, 128)
    hwo_pad = t_tiles * thw
    need = fixed + per_lane * thw
    vmem_limit = int(min(max(need + (8 << 20), 32 << 20), cap))
    return thw, t_tiles, hwo_pad, vmem_limit


def block_forward(x, weight, bias, stride):
    """x: [N, Cin, H, W] f32; weight: [Cout, Cin, 4, 4]; bias: [Cout] -> NCHW f32."""
    N, Cin, H, W = x.shape
    Cout = weight.shape[0]
    KH = KW = 4
    PAD = 1

    # Reflect padding (padding_mode='reflect'); stream activations in bf16.
    xp = jnp.pad(x.astype(jnp.bfloat16),
                 ((0, 0), (0, 0), (PAD, PAD), (PAD, PAD)), mode="reflect")
    Hp, Wp = H + 2 * PAD, W + 2 * PAD
    Hout = (Hp - KH) // stride + 1
    Wout = (Wp - KW) // stride + 1
    HWo = Hout * Wout
    K = Cin * KH * KW

    # Channel-major im2col: (N, K, HWo) with the flat K index ordered
    # (ci, kh, kw) to match weight.reshape(Cout, K). No transposes needed.
    taps = []
    for kh in range(KH):
        for kw in range(KW):
            sl = xp[:, :, kh: kh + (Hout - 1) * stride + 1: stride,
                          kw: kw + (Wout - 1) * stride + 1: stride]   # (N,Cin,Hout,Wout)
            taps.append(sl.reshape(N, Cin, 1, HWo))
    patches = jnp.concatenate(taps, axis=2).reshape(N, K, HWo)        # bf16

    THW, T, HWo_pad, vmem_limit = _plan_tiles(HWo, K, Cout)
    needs_mask = HWo_pad != HWo
    if needs_mask:
        patches = jnp.pad(patches, ((0, 0), (0, 0), (0, HWo_pad - HWo)))

    w_mat = weight.reshape(Cout, K).astype(jnp.bfloat16)              # (Cout, K)
    b_mat = bias.reshape(Cout, 1).astype(jnp.float32)                 # (Cout, 1)

    kernel = functools.partial(
        _block_kernel, thw=THW, hwo=HWo, inv_hw=1.0 / HWo, eps=1e-5,
        neg_slope=0.2, needs_mask=needs_mask)

    flops = 2 * N * Cout * K * HWo_pad
    bytes_accessed = (N * K * HWo_pad * 2 + Cout * K * 2 + Cout * 4
                      + 2 * N * Cout * HWo_pad * 4)

    out = pl.pallas_call(
        kernel,
        out_shape=jax.ShapeDtypeStruct((N, Cout, HWo_pad), jnp.float32),
        grid_spec=pltpu.PrefetchScalarGridSpec(
            num_scalar_prefetch=0,
            grid=(N, T),
            in_specs=[
                pl.BlockSpec((None, K, THW), lambda n, t: (n, 0, t)),
                pl.BlockSpec((Cout, K), lambda n, t: (0, 0)),
                pl.BlockSpec((Cout, 1), lambda n, t: (0, 0)),
            ],
            out_specs=pl.BlockSpec((None, Cout, HWo_pad), lambda n, t: (n, 0, 0)),
            scratch_shapes=[
                pltpu.VMEM((Cout, 128), jnp.float32),   # per-channel lane-partial sum
                pltpu.VMEM((Cout, 128), jnp.float32),   # per-channel lane-partial sum sq
            ],
        ),
        compiler_params=pltpu.CompilerParams(
            dimension_semantics=("parallel", "arbitrary"),
            vmem_limit_bytes=vmem_limit,
        ),
        cost_estimate=pl.CostEstimate(flops=flops, transcendentals=0,
                                      bytes_accessed=bytes_accessed),
    )(patches, w_mat, b_mat)

    # (N, Cout, HWo_pad) -> drop lane padding -> free-view NCHW reshape.
    return out[:, :, :HWo].reshape(N, Cout, Hout, Wout)


def _reference(x, weight, bias, stride):
    """Pure-JAX f32 reference of the PyTorch Block forward."""
    xp = jnp.pad(x, ((0, 0), (0, 0), (1, 1), (1, 1)), mode="reflect")
    y = jax.lax.conv_general_dilated(
        xp, weight, (stride, stride), "VALID",
        dimension_numbers=("NCHW", "OIHW", "NCHW"))
    y = y + bias[None, :, None, None]
    mean = y.mean(axis=(2, 3), keepdims=True)
    var = y.var(axis=(2, 3), keepdims=True)
    y = (y - mean) * jax.lax.rsqrt(var + 1e-5)
    return jnp.where(y >= 0, y, 0.2 * y)


if __name__ == "__main__":
    # Deterministic synthetic parameters & input (no checkpoint loading).
    in_channels, out_channels, stride = 4, 8, 2
    N, H, W = 2, 16, 16

    key = jax.random.PRNGKey(0)
    kx, kw, kb = jax.random.split(key, 3)
    x = jax.random.normal(kx, (N, in_channels, H, W), dtype=jnp.float32)

    fan_in = in_channels * 4 * 4
    bound = 1.0 / (fan_in ** 0.5)
    weight = jax.random.uniform(kw, (out_channels, in_channels, 4, 4),
                                minval=-bound, maxval=bound, dtype=jnp.float32)
    bias = jax.random.uniform(kb, (out_channels,),
                              minval=-bound, maxval=bound, dtype=jnp.float32)

    fwd = jax.jit(functools.partial(block_forward, stride=stride))
    y = fwd(x, weight, bias)
    jax.block_until_ready(y)

    # Shape sanity check: (16+2-4)//2+1 = 8
    assert y.shape == (N, out_channels, 8, 8), y.shape

    # Numerical sanity check vs. f32 reference (bf16 conv inputs -> loose tol).
    y_ref = _reference(x, weight, bias, stride)
    max_err = float(jnp.max(jnp.abs(y - y_ref)))
    assert max_err < 0.1, f"max abs err {max_err}"

    print("KERNEL_OK")
</pallas_src>

<mosaic_0001>
module attributes {stable_mosaic.version = 11 : i64} {
  func.func @_block_kernel(%arg0: i32, %arg1: i32, %arg2: memref<1x64x128xbf16, #tpu.memory_space<vmem>>, %arg3: memref<8x64xbf16, #tpu.memory_space<vmem>>, %arg4: memref<8x1xf32, #tpu.memory_space<vmem>>, %arg5: memref<1x8x128xf32, #tpu.memory_space<vmem>>, %arg6: memref<8x128xf32, #tpu.memory_space<vmem>>, %arg7: memref<8x128xf32, #tpu.memory_space<vmem>>) attributes {dimension_semantics = [#tpu.dimension_semantics<parallel>, #tpu.dimension_semantics<arbitrary>], iteration_bounds = array<i64: 2, 1>, scalar_prefetch = 0 : i64, scratch_operands = 2 : i64, tpu.core_type = #tpu.core_type<tc>, window_params = [{transform_indices = @transform_0, window_bounds = array<i64: 1, 64, 128>}, {pipeline_mode = #tpu.pipeline_mode<synchronous>, transform_indices = @transform_1, window_bounds = array<i64: 8, 64>}, {pipeline_mode = #tpu.pipeline_mode<synchronous>, transform_indices = @transform_2, window_bounds = array<i64: 8, 1>}, {transform_indices = @transform_3, window_bounds = array<i64: 1, 8, 128>}]} {
    %c0_i32 = arith.constant 0 : i32
    %0 = arith.cmpi eq, %arg1, %c0_i32 : i32
    %1 = arith.extui %0 : i1 to i32
    %c0_i32_0 = arith.constant 0 : i32
    %2 = arith.cmpi ne, %1, %c0_i32_0 : i32
    scf.if %2 {
      %cst_21 = arith.constant 0.000000e+00 : f32
      %36 = vector.broadcast %cst_21 : f32 to vector<8x128xf32>
      %c0_22 = arith.constant 0 : index
      %c0_23 = arith.constant 0 : index
      %37 = vector.load %arg6[%c0_22, %c0_23] : memref<8x128xf32, #tpu.memory_space<vmem>>, vector<8x128xf32>
      tpu.vector_store %arg6[%c0_22, %c0_23], %36 {strides = array<i32>} : memref<8x128xf32, #tpu.memory_space<vmem>>, vector<8x128xf32>,
      %cst_24 = arith.constant 0.000000e+00 : f32
      %38 = vector.broadcast %cst_24 : f32 to vector<8x128xf32>
      %c0_25 = arith.constant 0 : index
      %c0_26 = arith.constant 0 : index
      %39 = vector.load %arg7[%c0_25, %c0_26] : memref<8x128xf32, #tpu.memory_space<vmem>>, vector<8x128xf32>
      tpu.vector_store %arg7[%c0_25, %c0_26], %38 {strides = array<i32>} : memref<8x128xf32, #tpu.memory_space<vmem>>, vector<8x128xf32>,
    } else {
    }
    %c0 = arith.constant 0 : index
    %c0_1 = arith.constant 0 : index
    %3 = vector.load %arg3[%c0, %c0_1] : memref<8x64xbf16, #tpu.memory_space<vmem>>, vector<8x64xbf16>
    %c0_2 = arith.constant 0 : index
    %c0_3 = arith.constant 0 : index
    %c0_4 = arith.constant 0 : index
    %4 = vector.load %arg2[%c0_2, %c0_3, %c0_4] : memref<1x64x128xbf16, #tpu.memory_space<vmem>>, vector<1x64x128xbf16>
    %5 = vector.shape_cast %4 : vector<1x64x128xbf16> to vector<64x128xbf16>
    %cst = arith.constant dense<0.000000e+00> : vector<8x128xf32>
    %6 = tpu.matmul %3, %5, %cst {dimension_numbers = #tpu.dot_dimension_numbers<[1], [0], [0], [1], [0, 0, 1, 1], [], []>} : vector<8x64xbf16>, vector<64x128xbf16>, vector<8x128xf32> -> vector<8x128xf32>
    %c0_5 = arith.constant 0 : index
    %c0_6 = arith.constant 0 : index
    %7 = vector.load %arg4[%c0_5, %c0_6] : memref<8x1xf32, #tpu.memory_space<vmem>>, vector<8x1xf32>
    %8 = vector.broadcast %7 : vector<8x1xf32> to vector<8x128xf32>
    %9 = arith.addf %6, %8 : vector<8x128xf32>
    %10 = tpu.iota {dimensions = array<i32: 1>} : vector<1x128xi32>
    %c128_i32 = arith.constant 128 : i32
    %11 = arith.muli %arg1, %c128_i32 : i32
    %12 = vector.broadcast %11 : i32 to vector<1x128xi32>
    %13 = arith.addi %10, %12 : vector<1x128xi32>
    %c64_i32 = arith.constant 64 : i32
    %14 = vector.broadcast %c64_i32 : i32 to vector<1x128xi32>
    %15 = arith.cmpi slt, %13, %14 : vector<1x128xi32>
    %cst_7 = arith.constant 0.000000e+00 : f32
    %16 = vector.shape_cast %15 : vector<1x128xi1> to vector<1x128xi1>
    %17 = vector.broadcast %16 : vector<1x128xi1> to vector<8x128xi1>
    %18 = vector.broadcast %cst_7 : f32 to vector<8x128xf32>
    %19 = arith.select %17, %9, %18 : vector<8x128xi1>, vector<8x128xf32>
    %20 = arith.mulf %19, %19 : vector<8x128xf32>
    %c0_8 = arith.constant 0 : index
    %c0_9 = arith.constant 0 : index
    %21 = vector.load %arg6[%c0_8, %c0_9] : memref<8x128xf32, #tpu.memory_space<vmem>>, vector<8x128xf32>
    %22 = arith.addf %21, %19 : vector<8x128xf32>
    %c0_10 = arith.constant 0 : index
    %c0_11 = arith.constant 0 : index
    %23 = vector.load %arg6[%c0_10, %c0_11] : memref<8x128xf32, #tpu.memory_space<vmem>>, vector<8x128xf32>
    tpu.vector_store %arg6[%c0_10, %c0_11], %22 {strides = array<i32>} : memref<8x128xf32, #tpu.memory_space<vmem>>, vector<8x128xf32>,
    %c0_12 = arith.constant 0 : index
    %c0_13 = arith.constant 0 : index
    %24 = vector.load %arg7[%c0_12, %c0_13] : memref<8x128xf32, #tpu.memory_space<vmem>>, vector<8x128xf32>
    %25 = arith.addf %24, %20 : vector<8x128xf32>
    %c0_14 = arith.constant 0 : index
    %c0_15 = arith.constant 0 : index
    %26 = vector.load %arg7[%c0_14, %c0_15] : memref<8x128xf32, #tpu.memory_space<vmem>>, vector<8x128xf32>
    tpu.vector_store %arg7[%c0_14, %c0_15], %25 {strides = array<i32>} : memref<8x128xf32, #tpu.memory_space<vmem>>, vector<8x128xf32>,
    %c128_i32_16 = arith.constant 128 : i32
    %27 = arith.muli %arg1, %c128_i32_16 : i32
    %28 = tpu.assume_multiple %27, 128 : i32
    %c0_17 = arith.constant 0 : index
    %c0_18 = arith.constant 0 : index
    %29 = arith.index_cast %28 : i32 to index
    %30 = vector.load %arg5[%c0_17, %c0_18, %29] : memref<1x8x128xf32, #tpu.memory_space<vmem>>, vector<1x8x128xf32>
    %31 = vector.shape_cast %30 : vector<1x8x128xf32> to vector<8x128xf32>
    %32 = vector.shape_cast %9 : vector<8x128xf32> to vector<1x8x128xf32>
    tpu.vector_store %arg5[%c0_17, %c0_18, %29], %32 {strides = array<i32>} : memref<1x8x128xf32, #tpu.memory_space<vmem>>, vector<1x8x128xf32>,
    %c0_i32_19 = arith.constant 0 : i32
    %33 = arith.cmpi eq, %arg1, %c0_i32_19 : i32
    %34 = arith.extui %33 : i1 to i32
    %c0_i32_20 = arith.constant 0 : i32
    %35 = arith.cmpi ne, %34, %c0_i32_20 : i32
    scf.if %35 {
      %c0_21 = arith.constant 0 : index
      %c0_22 = arith.constant 0 : index
      %36 = vector.load %arg6[%c0_21, %c0_22] : memref<8x128xf32, #tpu.memory_space<vmem>>, vector<8x128xf32>
      %cst_23 = arith.constant dense<0.000000e+00> : vector<8xf32>
      %37 = vector.multi_reduction <add>, %36, %cst_23 [1] : vector<8x128xf32> to vector<8xf32>
      %38 = vector.shape_cast %37 : vector<8xf32> to vector<8x1xf32>
      %c0_24 = arith.constant 0 : index
      %c0_25 = arith.constant 0 : index
      %39 = vector.load %arg7[%c0_24, %c0_25] : memref<8x128xf32, #tpu.memory_space<vmem>>, vector<8x128xf32>
      %cst_26 = arith.constant dense<0.000000e+00> : vector<8xf32>
      %40 = vector.multi_reduction <add>, %39, %cst_26 [1] : vector<8x128xf32> to vector<8xf32>
      %41 = vector.shape_cast %40 : vector<8xf32> to vector<8x1xf32>
      %cst_27 = arith.constant 1.562500e-02 : f32
      %42 = vector.broadcast %cst_27 : f32 to vector<8x1xf32>
      %43 = arith.mulf %38, %42 : vector<8x1xf32>
      %cst_28 = arith.constant 1.562500e-02 : f32
      %44 = vector.broadcast %cst_28 : f32 to vector<8x1xf32>
      %45 = arith.mulf %41, %44 : vector<8x1xf32>
      %46 = arith.mulf %43, %43 : vector<8x1xf32>
      %47 = arith.subf %45, %46 : vector<8x1xf32>
      %cst_29 = arith.constant 0.000000e+00 : f32
      %48 = vector.broadcast %cst_29 : f32 to vector<8x1xf32>
      %49 = arith.maximumf %47, %48 : vector<8x1xf32>
      %cst_30 = arith.constant 9.99999974E-6 : f32
      %50 = vector.broadcast %cst_30 : f32 to vector<8x1xf32>
      %51 = arith.addf %49, %50 : vector<8x1xf32>
      %52 = math.rsqrt %51 : vector<8x1xf32>
      %53 = arith.mulf %43, %52 : vector<8x1xf32>
      %c0_31 = arith.constant 0 : index
      %c0_32 = arith.constant 0 : index
      %c0_33 = arith.constant 0 : index
      %54 = vector.load %arg5[%c0_31, %c0_32, %c0_33] : memref<1x8x128xf32, #tpu.memory_space<vmem>>, vector<1x8x128xf32>
      %55 = vector.shape_cast %54 : vector<1x8x128xf32> to vector<8x128xf32>
      %56 = vector.broadcast %52 : vector<8x1xf32> to vector<8x128xf32>
      %57 = arith.mulf %55, %56 : vector<8x128xf32>
      %58 = vector.broadcast %53 : vector<8x1xf32> to vector<8x128xf32>
      %59 = arith.subf %57, %58 : vector<8x128xf32>
      %cst_34 = arith.constant 0.000000e+00 : f32
      %60 = vector.broadcast %cst_34 : f32 to vector<8x128xf32>
      %61 = arith.cmpf oge, %59, %60 : vector<8x128xf32>
      %cst_35 = arith.constant 2.000000e-01 : f32
      %62 = vector.broadcast %cst_35 : f32 to vector<8x128xf32>
      %63 = arith.mulf %62, %59 : vector<8x128xf32>
      %64 = arith.select %61, %59, %63 : vector<8x128xi1>, vector<8x128xf32>
      %c0_36 = arith.constant 0 : index
      %c0_37 = arith.constant 0 : index
      %c0_38 = arith.constant 0 : index
      %65 = vector.load %arg5[%c0_36, %c0_37, %c0_38] : memref<1x8x128xf32, #tpu.memory_space<vmem>>, vector<1x8x128xf32>
      %66 = vector.shape_cast %65 : vector<1x8x128xf32> to vector<8x128xf32>
      %67 = vector.shape_cast %64 : vector<8x128xf32> to vector<1x8x128xf32>
      tpu.vector_store %arg5[%c0_36, %c0_37, %c0_38], %67 {strides = array<i32>} : memref<1x8x128xf32, #tpu.memory_space<vmem>>, vector<1x8x128xf32>,
    } else {
    }
    return
  }
  func.func @transform_0(%arg0: i32, %arg1: i32) -> (i32, i32, i32) {
    %c0_i32 = arith.constant 0 : i32
    %c0_i32_0 = arith.constant 0 : i32
    return %arg0, %c0_i32, %arg1 : i32, i32, i32
  }
  func.func @transform_1(%arg0: i32, %arg1: i32) -> (i32, i32) {
    %c0_i32 = arith.constant 0 : i32
    %c0_i32_0 = arith.constant 0 : i32
    %c0_i32_1 = arith.constant 0 : i32
    return %c0_i32, %c0_i32_0 : i32, i32
  }
  func.func @transform_2(%arg0: i32, %arg1: i32) -> (i32, i32) {
    %c0_i32 = arith.constant 0 : i32
    %c0_i32_0 = arith.constant 0 : i32
    %c0_i32_1 = arith.constant 0 : i32
    return %c0_i32, %c0_i32_0 : i32, i32
  }
  func.func @transform_3(%arg0: i32, %arg1: i32) -> (i32, i32, i32) {
    %c0_i32 = arith.constant 0 : i32
    %c0_i32_0 = arith.constant 0 : i32
    %c0_i32_1 = arith.constant 0 : i32
    return %arg0, %c0_i32, %c0_i32_0 : i32, i32, i32
  }
}

</mosaic_0001>

<llo_original>
// kernel: block_forward.1
$region0: #{block_forward.1}
  #allocation0 [shape = 'u32[]', space=smem, size = 0x4, offset = 0x4, fixed_abs, tag = 'smem constant byte address 0x4 - core index']
  #allocation1 [shape = 'u32[72,128]{1,0:T(1,128)}', space=vmem, size = 0x9000, scoped, tag = 'internal scratch']
  #allocation2 [shape = 'f32[8,128]{1,0:T(8,128)}', space=vmem, size = 0x1000, scoped, tag = 'scratch operand']
  #allocation3 [shape = 'f32[8,128]{1,0:T(8,128)}', space=vmem, size = 0x1000, scoped, tag = 'scratch operand']
  %s0 = inlined_call_operand.vmem [shape: bf16[2,64,128], index: 0, kind: input, shape index: {}]
  %s1 = inlined_call_operand.vmem [shape: bf16[8,64], index: 1, kind: input, shape index: {}]
  %s2 = inlined_call_operand.vmem [shape: f32[8,1], index: 2, kind: input, shape index: {}]
  %s3 = inlined_call_operand.vmem [shape: f32[2,8,128], index: 3, kind: output, shape index: {}]
  %s4 = sld [smem:[#allocation0]]
  $region53: #{block_forward.1} parent=0
    _
  %s6 = ssub.s32 1, %s4
  %s7 = scalar_select 0, %s6, %s4
  loop: start=0, step=1, limit=4
  $region2: #{block_forward.1} parent=0 // loop_pre_header
    _
  $region3: #{block_forward.1} parent=0 // loop_header
    %s9 = sphi 0, %s13
    %p10 = scmp.ge.s32.totalorder %s9, 4
    %s16 = sphi 0, %s28
    %s17 = sphi 0, %s24
    %s18 = sphi 0, %s16
    %s19 = sphi 0, %s17
    %s20 = sphi 0, %s18
    %s21 = sphi 0, %s19
    %s33 = sphi 0, %s35
    %s36 = sphi 0, %s33
    %s37 = sphi 0, %s36
    %s53 = sphi 0, %s37
    %s57 = sphi 0, %s57
    %s59 = sphi 0, %s57
    %s60 = sphi 0, %s59
    %s74 = sphi 0, %s60
    %s78 = sphi 0, %s78
    %s80 = sphi 0, %s78
    %s81 = sphi 0, %s80
    %s95 = sphi 0, %s81
    %s101 = sphi 0, %s103
    %s104 = sphi 0, %s101
    %s105 = sphi 0, %s104
    %s121 = sphi 0, %s105
  $region4: #{block_forward.1} parent=0 // loop_header_branch
    %12 = sbr.rel (%p10) target = $region8
  $region5: #{block_forward.1} parent=0 // loop_body
    %s14 = ssub.s32 %s9, 1
    %s15 = ssub.s32 %s9, 2
    %s22 = sadd.s32 1, %s17
    %p23 = scmp.ge.s32.totalorder %s22, 1
    %s24 = scalar_select %p23, 0, %s22
    %s25 = sadd.s32 1, %s16
    %s26 = scalar_select %p23, %s25, %s16
    %p27 = scmp.ge.s32.totalorder %s26, 2
    %s28 = scalar_select %p27, 0, %s26
    %s29 = ssub.s32 %s16, %s28
    %s30 = ssub.s32 %s17, %s24
    %s31 = sor.u32 %s29, %s30
    %p32 = scmp.eq.s32.totalorder %s31, 0
    %s34 = sadd.s32 %s33, 1
    %s35 = scalar_select %p32, %s33, %s34
    %p38 = pneg %p32
    %p39 = scmp.eq.s32.totalorder %s9, 1
    %p40 = por %p38, %p39
    %p41 = scmp.ne.s32.totalorder %s33, %s36
    %p42 = scmp.eq.s32.totalorder %s9, 0
    %p43 = por %p41, %p42
    %p44 = scmp.ne.s32.totalorder %s33, %s36
    %p45 = scmp.eq.s32.totalorder %s14, 1
    %p46 = por %p44, %p45
    %p47 = scmp.ne.s32.totalorder %s36, %s37
    %p48 = scmp.eq.s32.totalorder %s14, 0
    %p49 = por %p47, %p48
    %p50 = scmp.ne.s32.totalorder %s36, %s37
    %p51 = scmp.eq.s32.totalorder %s15, 1
    %p52 = por %p50, %p51
    %p54 = scmp.ne.s32.totalorder %s37, %s53
    %p55 = scmp.eq.s32.totalorder %s15, 0
    %p56 = por %p54, %p55
    %s58 = sadd.s32 %s57, 1
    %p61 = scmp.eq.s32.totalorder %s9, 1
    %p62 = scmp.ne.s32.totalorder %s57, %s59
    %p63 = scmp.eq.s32.totalorder %s9, 0
    %p64 = por %p62, %p63
    %p65 = scmp.ne.s32.totalorder %s57, %s59
    %p66 = scmp.eq.s32.totalorder %s14, 1
    %p67 = por %p65, %p66
    %p68 = scmp.ne.s32.totalorder %s59, %s60
    %p69 = scmp.eq.s32.totalorder %s14, 0
    %p70 = por %p68, %p69
    %p71 = scmp.ne.s32.totalorder %s59, %s60
    %p72 = scmp.eq.s32.totalorder %s15, 1
    %p73 = por %p71, %p72
    %p75 = scmp.ne.s32.totalorder %s60, %s74
    %p76 = scmp.eq.s32.totalorder %s15, 0
    %p77 = por %p75, %p76
    %s79 = sadd.s32 %s78, 1
    %p82 = scmp.eq.s32.totalorder %s9, 1
    %p83 = scmp.ne.s32.totalorder %s78, %s80
    %p84 = scmp.eq.s32.totalorder %s9, 0
    %p85 = por %p83, %p84
    %p86 = scmp.ne.s32.totalorder %s78, %s80
    %p87 = scmp.eq.s32.totalorder %s14, 1
    %p88 = por %p86, %p87
    %p89 = scmp.ne.s32.totalorder %s80, %s81
    %p90 = scmp.eq.s32.totalorder %s14, 0
    %p91 = por %p89, %p90
    %p92 = scmp.ne.s32.totalorder %s80, %s81
    %p93 = scmp.eq.s32.totalorder %s15, 1
    %p94 = por %p92, %p93
    %p96 = scmp.ne.s32.totalorder %s81, %s95
    %p97 = scmp.eq.s32.totalorder %s15, 0
    %p98 = por %p96, %p97
    %s99 = ssub.s32 %s16, %s28
    %p100 = scmp.eq.s32.totalorder %s99, 0
    %s102 = sadd.s32 %s101, 1
    %s103 = scalar_select %p100, %s101, %s102
    %p106 = pneg %p100
    %p107 = scmp.eq.s32.totalorder %s9, 1
    %p108 = por %p106, %p107
    %p109 = scmp.ne.s32.totalorder %s101, %s104
    %p110 = scmp.eq.s32.totalorder %s9, 0
    %p111 = por %p109, %p110
    %p112 = scmp.ne.s32.totalorder %s101, %s104
    %p113 = scmp.eq.s32.totalorder %s14, 1
    %p114 = por %p112, %p113
    %p115 = scmp.ne.s32.totalorder %s104, %s105
    %p116 = scmp.eq.s32.totalorder %s14, 0
    %p117 = por %p115, %p116
    %p118 = scmp.ne.s32.totalorder %s104, %s105
    %p119 = scmp.eq.s32.totalorder %s15, 1
    %p120 = por %p118, %p119
    %p122 = scmp.ne.s32.totalorder %s105, %s121
    %p123 = scmp.eq.s32.totalorder %s15, 0
    %p124 = por %p122, %p123
    %p125 = scmp.le.s32.totalorder 1, %s9
    %p126 = scmp.lt.s32.totalorder %s9, 3
    %p127 = pnand %p125, %p126
    %p128 = pneg %p127
    // Predicated region
    $region9: #{block_forward.1} parent=5 // pred_check
      _
    $region10: #{block_forward.1} parent=5 // pred_check_branch
      %130 = sbr.rel (%p127) target = $region12
    $region11: #{block_forward.1} parent=5 // pred_region
      %s131 = ssub.s32 %s9, 1
      // Predicated region
      $region13: #{block_forward.1} parent=11 // pred_check
        %p132 = pneg %p70
      $region14: #{block_forward.1} parent=11 // pred_check_branch
        %134 = sbr.rel (%p132) target = $region16
      $region15: #{block_forward.1} parent=11 // pred_region
        _
      $region16: #{block_forward.1} parent=11 // pred_fallthru
        _
      // Predicated region
      $region17: #{block_forward.1} parent=11 // pred_check
        %p135 = pneg %p91
      $region18: #{block_forward.1} parent=11 // pred_check_branch
        %137 = sbr.rel (%p135) target = $region20
      $region19: #{block_forward.1} parent=11 // pred_region
        _
      $region20: #{block_forward.1} parent=11 // pred_fallthru
        _
    $region12: #{block_forward.1} parent=5 // pred_fallthru
      _
    %p138 = scmp.lt.s32.totalorder %s9, 2
    // Predicated region
    $region21: #{block_forward.1} parent=5 // pred_check
      %p139 = pneg %p138
    $region22: #{block_forward.1} parent=5 // pred_check_branch
      %141 = sbr.rel (%p139) target = $region24
    $region23: #{block_forward.1} parent=5 // pred_region
      // Predicated region
      $region25: #{block_forward.1} parent=23 // pred_check
        %p142 = pneg %p43
      $region26: #{block_forward.1} parent=23 // pred_check_branch
        %144 = sbr.rel (%p142) target = $region28
      $region27: #{block_forward.1} parent=23 // pred_region
        %p145 = scmp.lt.s32.totalorder %s16, 1
        %s146 = scalar_select %p145, %s16, 1
        %p147 = scmp.lt.s32.totalorder %s17, 0
        %s148 = scalar_select %p147, %s17, 0
        %s149 = smul.addr %s146, 8
        %s150 = sadd.s32 %s148, %s149
        %s151 = smul.addr %s150, 4
        %s152 = scalar_lea.vmem %s0, %s151
      $region28: #{block_forward.1} parent=23 // pred_fallthru
        _
    $region24: #{block_forward.1} parent=5 // pred_fallthru
      _
    %p153 = scmp.le.s32.totalorder 1, %s9
    %p154 = scmp.lt.s32.totalorder %s9, 3
    %p155 = pnand %p153, %p154
    %p156 = pneg %p155
    // Predicated region
    $region29: #{block_forward.1} parent=5 // pred_check
      _
    $region30: #{block_forward.1} parent=5 // pred_check_branch
      %158 = sbr.rel (%p155) target = $region32
    $region31: #{block_forward.1} parent=5 // pred_region
      %s159 = ssub.s32 %s9, 1
      %p160 = scmp.lt.s32.totalorder %s18, 1
      %s161 = scalar_select %p160, %s18, 1
      %p162 = scmp.lt.s32.totalorder %s19, 0
      %s163 = scalar_select %p162, %s19, 0
      %s164 = smul.addr %s161, 8
      %s165 = sadd.s32 %s163, %s164
      %s166 = smul.addr %s165, 4
      %s167 = scalar_lea.vmem %s0, %s166
      %p168 = pneg %p49
      %p169 = pneg %p46
      %p170 = pneg %p70
      %p171 = pneg %p67
      %p172 = pneg %p91
      %p173 = pneg %p88
      %p174 = pneg %p117
      %p175 = pneg %p114
      %p176 = scmp.lt.s32.totalorder %s18, 1
      %s177 = scalar_select %p176, %s18, 1
      %s178 = smul.addr %s177, 8
      %s179 = scalar_lea.vmem %s3, %s178
      %p180 = scmp.lt.s32.totalorder %s18, 1
      %s181 = scalar_select %p180, %s18, 1
      %p182 = scmp.lt.s32.totalorder %s19, 0
      %s183 = scalar_select %p182, %s19, 0
      %s184 = smul.addr %s181, 8
      %s185 = sadd.s32 %s183, %s184
      %s186 = smul.addr %s185, 4
      %s187 = scalar_lea.vmem %s0, %s186
      %p188 = scmp.lt.s32.totalorder %s18, 1
      %s189 = scalar_select %p188, %s18, 1
      %s190 = smul.addr %s189, 8
      %s191 = scalar_lea.vmem %s3, %s190
      %p193 = scmp.eq.s32.totalorder %s19, 0
      // Predicated region
      $region33: #{block_forward.1} parent=31 // pred_check
        %p194 = pneg %p193
      $region34: #{block_forward.1} parent=31 // pred_check_branch
        %196 = sbr.rel (%p194) target = $region36
      $region35: #{block_forward.1} parent=31 // pred_region
        %197 = vst [vmem:[#allocation2] sm:$0xff] 0.0
        %198 = vst [vmem:[#allocation3] sm:$0xff] 0.0
      $region36: #{block_forward.1} parent=31 // pred_fallthru
        _
      %v199 = vld [vmem:[%s1] sm:$0xf]
      %v200 = vld [vmem:[%s187] sm:$0xf]
      %v201 = vld [vmem:[%s187 + $0x4] sm:$0xf]
      %v202 = vld [vmem:[%s187 + $0x8] sm:$0xf]
      %v203 = vld [vmem:[%s187 + $0xc] sm:$0xf]
      %v204 = vld [vmem:[%s187 + $0x10] sm:$0xf]
      %v205 = vld [vmem:[%s187 + $0x14] sm:$0xf]
      %v206 = vld [vmem:[%s187 + $0x18] sm:$0xf]
      %v207 = vld [vmem:[%s187 + $0x1c] sm:$0xf]
      %v208 = vld [vmem:[%s2] sm:$0xff]
      %210 = vset.pattern.permute.xlu0 0
      %211 = vperm.xlu0 %210, %v208
      %v212 = vpop.permute.xlu0 %211
      %v222 = vunpack.c.l.b16 %v200
      %v223 = vunpack.c.l.b16 %v201
      %v224 = vunpack.c.l.b16 %v202
      %v225 = vunpack.c.l.b16 %v203
      %v226 = vunpack.c.l.b16 %v204
      %v227 = vunpack.c.l.b16 %v205
      %v228 = vunpack.c.l.b16 %v206
      %v229 = vunpack.c.l.b16 %v207
      %v230 = vpack.c.b16 %v223, %v222
      %v231 = vpack.c.b16 %v225, %v224
      %v232 = vpack.c.b16 %v227, %v226
      %v233 = vpack.c.b16 %v229, %v228
      %vm238 = vcmask 523264
      %v240 = vsel %vm238, %v199, 0
      %242 = vmatpush.bf16.msra.mxu0 0
      %243 = vmatpush.bf16.msra.mxu0 0
      %244 = vmatpush.bf16.msra.mxu0 0
      %245 = vmatpush.bf16.msra.mxu0 0
      %246 = vmatpush.bf16.msra.mxu0 %v233
      %247 = vmatpush.bf16.msra.mxu0 %v232
      %248 = vmatpush.bf16.msra.mxu0 %v231
      %249 = vmatpush.bf16.msra.mxu0 %v230
      %250 = vmatmul.bf16.gmra.mxu0 %v240
      %v251 = vpop.f32.mrf.mxu0
      %v252 = vadd.f32 %v212, %v251
      %v253 = vpop.f32.mrf.mxu0
      %254 = vdwg.mxu0
      %v255 = vlaneseq
      %v256 = vand.u32 %v255, 127
      %s257 = smul.u32 %s19, 128
      %v258 = vstv %s257
      %v259 = vadd.s32 %v256, %v258
      %vm260 = vcmp.lt.s32.totalorder %v259, 64
      %v261 = vsel %vm260, 1, 0
      %vm262 = vcmp.eq.s32.totalorder %v261, 1
      %v263 = vsel %vm262, %v252, 0.0
      %v264 = vmul.f32 %v263, %v263
      %v265 = vld [vmem:[#allocation2] sm:$0xff]
      %v266 = vadd.f32 %v265, %v263
      %267 = vst [vmem:[#allocation2] sm:$0xff] %v266
      %v268 = vld [vmem:[#allocation3] sm:$0xff]
      %v269 = vadd.f32 %v268, %v264
      %270 = vst [vmem:[#allocation3] sm:$0xff] %v269
      %s271 = sshra.s32 %s257, 7
      %s272 = sand.u32 %s257, 127
      %s273 = scalar_lea.vmem %s191, %s271
      %274 = vst [vmem:[%s273] sm:$0xff] %v252
      // Predicated region
      $region37: #{block_forward.1} parent=31 // pred_check
        %p275 = pneg %p193
      $region38: #{block_forward.1} parent=31 // pred_check_branch
        %277 = sbr.rel (%p275) target = $region40
      $region39: #{block_forward.1} parent=31 // pred_region
        %v278 = vld [vmem:[#allocation2] sm:$0xff]
        %279 = vadd.xlane.f32.xlu0 %v278
        %v280 = vpop.xlane.xlu0 %279
        %v281 = vld [vmem:[#allocation3] sm:$0xff]
        %282 = vadd.xlane.f32.xlu0 %v281
        %v283 = vpop.xlane.xlu0 %282
        %v284 = vmul.f32 %v280, 0.015625
        %v285 = vmul.f32 %v283, 0.015625
        %v286 = vmul.f32 %v284, %v284
        %v287 = vsub.f32 %v285, %v286
        %v288 = vmax.f32 %v287, 0.0
        %v289 = vadd.f32 %v288, 1e-05
        %v290 = vrsqrt.pop %v289
        %v291 = vmul.f32 %v290, %v289
        %v292 = vmul.f32 %v291, %v290
        %v293 = vmul.f32 0.5, %v292
        %v294 = vsub.f32 1.5, %v293
        %v295 = vmul.f32 %v290, %v294
        %vm296 = vweird.f32 %v289
        %vm297 = vweird.f32 %v290
        %vm298 = vmor %vm296, %vm297
        %v299 = vsel %vm298, %v290, %v295
        %v300 = vmul.f32 %v284, %v299
        %v301 = vld [vmem:[%s191] sm:$0xff]
        %v302 = vmul.f32 %v301, %v299
        %v303 = vsub.f32 %v302, %v300
        %vm304 = vcmp.ge.f32.partialorder %v303, 0.0
        %v305 = vmul.f32 %v303, 0.2
        %v306 = vsel %vm304, %v303, %v305
        %307 = vst [vmem:[%s191] sm:$0xff] %v306
      $region40: #{block_forward.1} parent=31 // pred_fallthru
        _
      %p308 = scmp.lt.s32.totalorder %s18, 1
      %s309 = scalar_select %p308, %s18, 1
      %s310 = smul.addr %s309, 8
      %s311 = scalar_lea.vmem %s3, %s310
      // Predicated region
      $region41: #{block_forward.1} parent=31 // pred_check
        %p312 = pneg %p114
      $region42: #{block_forward.1} parent=31 // pred_check_branch
        %314 = sbr.rel (%p312) target = $region44
      $region43: #{block_forward.1} parent=31 // pred_region
        _
      $region44: #{block_forward.1} parent=31 // pred_fallthru
        _
    $region32: #{block_forward.1} parent=5 // pred_fallthru
      _
    %p315 = scmp.le.s32.totalorder 2, %s9
    // Predicated region
    $region45: #{block_forward.1} parent=5 // pred_check
      %p316 = pneg %p315
    $region46: #{block_forward.1} parent=5 // pred_check_branch
      %318 = sbr.rel (%p316) target = $region48
    $region47: #{block_forward.1} parent=5 // pred_region
      %s319 = ssub.s32 %s9, 2
      // Predicated region
      $region49: #{block_forward.1} parent=47 // pred_check
        %p320 = pneg %p120
      $region50: #{block_forward.1} parent=47 // pred_check_branch
        %322 = sbr.rel (%p320) target = $region52
      $region51: #{block_forward.1} parent=47 // pred_region
        %p323 = scmp.lt.s32.totalorder %s20, 1
        %s324 = scalar_select %p323, %s20, 1
        %s325 = smul.addr %s324, 8
        %s326 = scalar_lea.vmem %s3, %s325
      $region52: #{block_forward.1} parent=47 // pred_fallthru
        _
    $region48: #{block_forward.1} parent=5 // pred_fallthru
      _
  $region6: #{block_forward.1} parent=0 // loop_footer
    %s13 = sadd.s32 1, %s9
  $region7: #{block_forward.1} parent=0 // loop_footer_branch
    %8 = sbr.rel target = $region3
  $region8: #{block_forward.1} parent=0 // loop_exit
    _

</llo_original>
